<compile_context>
chip_gen: v6e
topology: v6e:2x2x1
jax: 0.10.0
libtpu: 0.0.40
codegen_flags: <defaults>
</compile_context>

<pallas_src>
import jax
import jax.numpy as jnp
from jax.experimental import pallas as pl
from jax.experimental.pallas import tpu as pltpu

Z_DIM = 100
L_DIM = 10
HID_DIM = 200                # logical hidden size (LayerNorm over exactly 200)
OUT_DIM = 784                # logical output
OUT_PAD = 896                # 7 * 128 -> unmasked lane-dense stores
LN_EPS = 1e-5
LRELU_SLOPE = 0.02


def _generator_kernel(seed_ref, label_ref, w1a_ref, w1b_ref, affine_ref,
                      w2_ref, b2_ref, o_ref):
    # seed: (TM,100) f32 | label: (TM,10) f32 | w1a: (100,200) bf16
    # w1b: (10,200) bf16 | affine: (3,200) f32 (b1/gamma/beta)
    # w2: (200,896) bf16 | b2: (1,896) f32 | out: (TM,896) bf16
    s = seed_ref[...].astype(jnp.bfloat16)
    l = label_ref[...].astype(jnp.bfloat16)

    b1 = affine_ref[0:1, :]
    gamma = affine_ref[1:2, :]
    beta = affine_ref[2:3, :]

    # Linear(110 -> 200) without materializing the concat: two MXU matmuls,
    # f32 accumulation.
    h = (jnp.dot(s, w1a_ref[...], preferred_element_type=jnp.float32)
         + jnp.dot(l, w1b_ref[...], preferred_element_type=jnp.float32)
         + b1)

    # LeakyReLU(0.02) in f32 (v5e has no bf16 VPU).
    h = jnp.where(h > 0, h, LRELU_SLOPE * h)

    # LayerNorm(200): biased variance over the 200 real hidden features.
    mean = jnp.mean(h, axis=-1, keepdims=True)
    var = jnp.mean((h - mean) * (h - mean), axis=-1, keepdims=True)
    h = (h - mean) * jax.lax.rsqrt(var + LN_EPS)
    h = h * gamma + beta

    # Linear(200 -> 784, padded to 896) + Sigmoid (tanh form: 1 EUP push/elem).
    y = jnp.dot(h.astype(jnp.bfloat16), w2_ref[...],
                preferred_element_type=jnp.float32) + b2_ref[...]
    o_ref[...] = (0.5 * jnp.tanh(0.5 * y) + 0.5).astype(jnp.bfloat16)


def _round_up(x, m):
    return ((x + m - 1) // m) * m


def _pick_tm(batch):
    """Batch-tile size: right-sized for small B, large (<=1024) and >=2 grid
    steps for big B so v7x's two TensorCores both get work, while staying
    inside v5e's 16 MiB default scoped VMEM (bf16 output tiles)."""
    b16 = _round_up(max(batch, 1), 16)
    if b16 <= 256:
        return b16                      # single tile: splitting only adds overhead
    return min(1024, _round_up(pl.cdiv(b16, 2), 16))


def generator_forward_padded(seed_batch, label_batch, params, tm=None):
    """Performance path: returns the lane-dense (b_pad, 896) bfloat16 output.
    Rows >= B and columns >= 784 are padding; no extra HBM passes are spent
    trimming them here."""
    w1a, w1b, affine, w2, b2 = params
    B = seed_batch.shape[0]
    if tm is None:
        tm = _pick_tm(B)
    b_pad = pl.cdiv(B, tm) * tm

    seed = seed_batch.astype(jnp.float32)
    label = label_batch.astype(jnp.float32)
    if b_pad != B:
        seed = jnp.pad(seed, ((0, b_pad - B), (0, 0)))
        label = jnp.pad(label, ((0, b_pad - B), (0, 0)))

    grid = (b_pad // tm,)
    const = lambda i: (0, 0)   # weights/biases stay VMEM-resident across steps

    out = pl.pallas_call(
        _generator_kernel,
        out_shape=jax.ShapeDtypeStruct((b_pad, OUT_PAD), jnp.bfloat16),
        grid_spec=pltpu.PrefetchScalarGridSpec(
            num_scalar_prefetch=0,
            grid=grid,
            in_specs=[
                pl.BlockSpec((tm, Z_DIM), lambda i: (i, 0)),      # seed tile
                pl.BlockSpec((tm, L_DIM), lambda i: (i, 0)),      # label tile
                pl.BlockSpec((Z_DIM, HID_DIM), const),            # w1a (bf16)
                pl.BlockSpec((L_DIM, HID_DIM), const),            # w1b (bf16)
                pl.BlockSpec((3, HID_DIM), const),                # b1/gamma/beta
                pl.BlockSpec((HID_DIM, OUT_PAD), const),          # w2 (bf16)
                pl.BlockSpec((1, OUT_PAD), const),                # b2
            ],
            out_specs=pl.BlockSpec((tm, OUT_PAD), lambda i: (i, 0)),
        ),
        compiler_params=pltpu.CompilerParams(
            dimension_semantics=("parallel",)),
    )(seed, label, w1a, w1b, affine, w2, b2)
    return out


def generator_forward_batched(seed_batch, label_batch, params, tm=None):
    """Module-compatible API: (B,100),(B,10) -> (B,784) bfloat16."""
    out = generator_forward_padded(seed_batch, label_batch, params, tm=tm)
    B = seed_batch.shape[0]
    return out[:B, :OUT_DIM]


def generator_forward(seed_vec, label_vec, params):
    """Single-sample API matching the PyTorch module: (100,), (10,) -> (784,)."""
    out = generator_forward_batched(seed_vec[None, :], label_vec[None, :], params)
    return out[0]


def init_params(key):
    """Deterministic synthetic parameters (bf16 weights, zero-padded layouts)."""
    k1, k2, k3, k4 = jax.random.split(key, 4)

    # Linear(110, 200), stored (in, out) and split: seed rows / label rows.
    w1 = jax.random.normal(k1, (Z_DIM + L_DIM, HID_DIM), jnp.float32)
    w1 = w1 * (1.0 / jnp.sqrt(Z_DIM + L_DIM))
    w1a = w1[:Z_DIM].astype(jnp.bfloat16)            # (100, 200)
    w1b = w1[Z_DIM:].astype(jnp.bfloat16)            # (10, 200)

    # b1 / LayerNorm gamma / LayerNorm beta stacked into one (3, 200) operand.
    b1 = jax.random.normal(k2, (HID_DIM,), jnp.float32) * 0.01
    gamma = jnp.ones((HID_DIM,), jnp.float32)
    beta = jnp.zeros((HID_DIM,), jnp.float32)
    affine = jnp.stack([b1, gamma, beta], axis=0)     # (3, 200)

    # Linear(200, 784): columns 784..895 are zero padding.
    w2 = jax.random.normal(k3, (HID_DIM, OUT_DIM), jnp.float32) * (1.0 / jnp.sqrt(HID_DIM))
    w2 = jnp.pad(w2, ((0, 0), (0, OUT_PAD - OUT_DIM))).astype(jnp.bfloat16)  # (200, 896)
    b2 = jax.random.normal(k4, (1, OUT_DIM), jnp.float32) * 0.01
    b2 = jnp.pad(b2, ((0, 0), (0, OUT_PAD - OUT_DIM)))                       # (1, 896)

    return (w1a, w1b, affine, w2, b2)


def reference_forward_batched(seed_batch, label_batch, params):
    """Pure-JAX reference with matching matmul numerics (bf16 inputs, f32 acc)."""
    w1a, w1b, affine, w2, b2 = params
    b1, gamma, beta = affine[0:1], affine[1:2], affine[2:3]
    s = seed_batch.astype(jnp.bfloat16)
    l = label_batch.astype(jnp.bfloat16)
    h = (jnp.dot(s, w1a, preferred_element_type=jnp.float32)
         + jnp.dot(l, w1b, preferred_element_type=jnp.float32) + b1)
    h = jnp.where(h > 0, h, LRELU_SLOPE * h)
    mean = jnp.mean(h, axis=-1, keepdims=True)
    var = jnp.mean((h - mean) * (h - mean), axis=-1, keepdims=True)
    h = (h - mean) * jax.lax.rsqrt(var + LN_EPS)
    h = h * gamma + beta
    y = jnp.dot(h.astype(jnp.bfloat16), w2, preferred_element_type=jnp.float32) + b2
    return jax.nn.sigmoid(y)[:, :OUT_DIM]


if __name__ == "__main__":
    key = jax.random.PRNGKey(0)
    k_params, k_seed, k_seed2 = jax.random.split(key, 3)

    params = init_params(k_params)

    # Small deterministic batch: 8 samples, one-hot labels 0..7.
    B = 8
    seed_batch = jax.random.normal(k_seed, (B, Z_DIM), jnp.float32)
    label_batch = jax.nn.one_hot(jnp.arange(B) % L_DIM, L_DIM, dtype=jnp.float32)

    out = generator_forward_batched(seed_batch, label_batch, params)
    out = jax.block_until_ready(out)
    ref = reference_forward_batched(seed_batch, label_batch, params)
    assert out.shape == (B, OUT_DIM)
    assert out.dtype == jnp.bfloat16
    # bf16 output -> ~2^-8 absolute precision on [0,1] sigmoid values.
    assert jnp.allclose(out.astype(jnp.float32), ref, atol=5e-3, rtol=0), \
        "batched mismatch vs reference"

    # A second (still small) batch that is not a multiple of 16, to exercise
    # the row-padding path.
    B2 = 40
    seed2 = jax.random.normal(k_seed2, (B2, Z_DIM), jnp.float32)
    label2 = jax.nn.one_hot(jnp.arange(B2) % L_DIM, L_DIM, dtype=jnp.float32)
    out2 = jax.block_until_ready(generator_forward_batched(seed2, label2, params))
    ref2 = reference_forward_batched(seed2, label2, params)
    assert out2.shape == (B2, OUT_DIM)
    assert jnp.allclose(out2.astype(jnp.float32), ref2, atol=5e-3, rtol=0), \
        "padded-batch mismatch vs reference"

    # Single-sample path matching the original nn.Module forward signature.
    out1 = jax.block_until_ready(generator_forward(seed_batch[0], label_batch[0], params))
    assert out1.shape == (OUT_DIM,)
    assert jnp.allclose(out1.astype(jnp.float32), ref[0], atol=5e-3, rtol=0), \
        "single-sample mismatch"

    print("KERNEL_OK")
</pallas_src>

<mosaic_0001>
module attributes {stable_mosaic.version = 11 : i64} {
  func.func @_generator_kernel(%arg0: i32, %arg1: memref<16x100xf32, #tpu.memory_space<vmem>>, %arg2: memref<16x10xf32, #tpu.memory_space<vmem>>, %arg3: memref<100x200xbf16, #tpu.memory_space<vmem>>, %arg4: memref<10x200xbf16, #tpu.memory_space<vmem>>, %arg5: memref<3x200xf32, #tpu.memory_space<vmem>>, %arg6: memref<200x896xbf16, #tpu.memory_space<vmem>>, %arg7: memref<1x896xf32, #tpu.memory_space<vmem>>, %arg8: memref<16x896xbf16, #tpu.memory_space<vmem>>) attributes {dimension_semantics = [#tpu.dimension_semantics<parallel>], iteration_bounds = array<i64: 1>, scalar_prefetch = 0 : i64, scratch_operands = 0 : i64, tpu.core_type = #tpu.core_type<tc>, window_params = [{transform_indices = @transform_0, window_bounds = array<i64: 16, 100>}, {transform_indices = @transform_1, window_bounds = array<i64: 16, 10>}, {pipeline_mode = #tpu.pipeline_mode<synchronous>, transform_indices = @transform_2, window_bounds = array<i64: 100, 200>}, {pipeline_mode = #tpu.pipeline_mode<synchronous>, transform_indices = @transform_3, window_bounds = array<i64: 10, 200>}, {pipeline_mode = #tpu.pipeline_mode<synchronous>, transform_indices = @transform_4, window_bounds = array<i64: 3, 200>}, {pipeline_mode = #tpu.pipeline_mode<synchronous>, transform_indices = @transform_5, window_bounds = array<i64: 200, 896>}, {pipeline_mode = #tpu.pipeline_mode<synchronous>, transform_indices = @transform_6, window_bounds = array<i64: 1, 896>}, {transform_indices = @transform_7, window_bounds = array<i64: 16, 896>}]} {
    %c0 = arith.constant 0 : index
    %c0_0 = arith.constant 0 : index
    %0 = vector.load %arg1[%c0, %c0_0] : memref<16x100xf32, #tpu.memory_space<vmem>>, vector<16x100xf32>
    %1 = arith.truncf %0 : vector<16x100xf32> to vector<16x100xbf16>
    %c0_1 = arith.constant 0 : index
    %c0_2 = arith.constant 0 : index
    %2 = vector.load %arg2[%c0_1, %c0_2] : memref<16x10xf32, #tpu.memory_space<vmem>>, vector<16x10xf32>
    %3 = arith.truncf %2 : vector<16x10xf32> to vector<16x10xbf16>
    %c0_3 = arith.constant 0 : index
    %c0_4 = arith.constant 0 : index
    %4 = vector.load %arg5[%c0_3, %c0_4] : memref<3x200xf32, #tpu.memory_space<vmem>>, vector<1x200xf32>
    %c1 = arith.constant 1 : index
    %c0_5 = arith.constant 0 : index
    %5 = vector.load %arg5[%c1, %c0_5] : memref<3x200xf32, #tpu.memory_space<vmem>>, vector<1x200xf32>
    %c2 = arith.constant 2 : index
    %c0_6 = arith.constant 0 : index
    %6 = vector.load %arg5[%c2, %c0_6] : memref<3x200xf32, #tpu.memory_space<vmem>>, vector<1x200xf32>
    %c0_7 = arith.constant 0 : index
    %c0_8 = arith.constant 0 : index
    %7 = vector.load %arg3[%c0_7, %c0_8] : memref<100x200xbf16, #tpu.memory_space<vmem>>, vector<100x200xbf16>
    %cst = arith.constant dense<0.000000e+00> : vector<16x200xf32>
    %8 = tpu.matmul %1, %7, %cst {dimension_numbers = #tpu.dot_dimension_numbers<[1], [0], [0], [1], [0, 0, 1, 1], [], []>} : vector<16x100xbf16>, vector<100x200xbf16>, vector<16x200xf32> -> vector<16x200xf32>
    %c0_9 = arith.constant 0 : index
    %c0_10 = arith.constant 0 : index
    %9 = vector.load %arg4[%c0_9, %c0_10] : memref<10x200xbf16, #tpu.memory_space<vmem>>, vector<10x200xbf16>
    %cst_11 = arith.constant dense<0.000000e+00> : vector<16x200xf32>
    %10 = tpu.matmul %3, %9, %cst_11 {dimension_numbers = #tpu.dot_dimension_numbers<[1], [0], [0], [1], [0, 0, 1, 1], [], []>} : vector<16x10xbf16>, vector<10x200xbf16>, vector<16x200xf32> -> vector<16x200xf32>
    %11 = arith.addf %8, %10 : vector<16x200xf32>
    %12 = vector.broadcast %4 : vector<1x200xf32> to vector<16x200xf32>
    %13 = arith.addf %11, %12 : vector<16x200xf32>
    %cst_12 = arith.constant 0.000000e+00 : f32
    %14 = vector.broadcast %cst_12 : f32 to vector<16x200xf32>
    %15 = arith.cmpf ogt, %13, %14 : vector<16x200xf32>
    %cst_13 = arith.constant 2.000000e-02 : f32
    %16 = vector.broadcast %cst_13 : f32 to vector<16x200xf32>
    %17 = arith.mulf %16, %13 : vector<16x200xf32>
    %18 = arith.select %15, %13, %17 : vector<16x200xi1>, vector<16x200xf32>
    %cst_14 = arith.constant dense<0.000000e+00> : vector<16xf32>
    %19 = vector.multi_reduction <add>, %18, %cst_14 [1] : vector<16x200xf32> to vector<16xf32>
    %20 = vector.shape_cast %19 : vector<16xf32> to vector<16x1xf32>
    %cst_15 = arith.constant 2.000000e+02 : f32
    %21 = vector.broadcast %cst_15 : f32 to vector<16x1xf32>
    %22 = arith.divf %20, %21 : vector<16x1xf32>
    %23 = vector.broadcast %22 : vector<16x1xf32> to vector<16x200xf32>
    %24 = arith.subf %18, %23 : vector<16x200xf32>
    %25 = vector.broadcast %22 : vector<16x1xf32> to vector<16x200xf32>
    %26 = arith.subf %18, %25 : vector<16x200xf32>
    %27 = arith.mulf %24, %26 : vector<16x200xf32>
    %cst_16 = arith.constant dense<0.000000e+00> : vector<16xf32>
    %28 = vector.multi_reduction <add>, %27, %cst_16 [1] : vector<16x200xf32> to vector<16xf32>
    %29 = vector.shape_cast %28 : vector<16xf32> to vector<16x1xf32>
    %cst_17 = arith.constant 2.000000e+02 : f32
    %30 = vector.broadcast %cst_17 : f32 to vector<16x1xf32>
    %31 = arith.divf %29, %30 : vector<16x1xf32>
    %32 = vector.broadcast %22 : vector<16x1xf32> to vector<16x200xf32>
    %33 = arith.subf %18, %32 : vector<16x200xf32>
    %cst_18 = arith.constant 9.99999974E-6 : f32
    %34 = vector.broadcast %cst_18 : f32 to vector<16x1xf32>
    %35 = arith.addf %31, %34 : vector<16x1xf32>
    %36 = math.rsqrt %35 : vector<16x1xf32>
    %37 = vector.broadcast %36 : vector<16x1xf32> to vector<16x200xf32>
    %38 = arith.mulf %33, %37 : vector<16x200xf32>
    %39 = vector.broadcast %5 : vector<1x200xf32> to vector<16x200xf32>
    %40 = arith.mulf %38, %39 : vector<16x200xf32>
    %41 = vector.broadcast %6 : vector<1x200xf32> to vector<16x200xf32>
    %42 = arith.addf %40, %41 : vector<16x200xf32>
    %43 = arith.truncf %42 : vector<16x200xf32> to vector<16x200xbf16>
    %c0_19 = arith.constant 0 : index
    %c0_20 = arith.constant 0 : index
    %44 = vector.load %arg6[%c0_19, %c0_20] : memref<200x896xbf16, #tpu.memory_space<vmem>>, vector<200x896xbf16>
    %cst_21 = arith.constant dense<0.000000e+00> : vector<16x896xf32>
    %45 = tpu.matmul %43, %44, %cst_21 {dimension_numbers = #tpu.dot_dimension_numbers<[1], [0], [0], [1], [0, 0, 1, 1], [], []>} : vector<16x200xbf16>, vector<200x896xbf16>, vector<16x896xf32> -> vector<16x896xf32>
    %c0_22 = arith.constant 0 : index
    %c0_23 = arith.constant 0 : index
    %46 = vector.load %arg7[%c0_22, %c0_23] : memref<1x896xf32, #tpu.memory_space<vmem>>, vector<1x896xf32>
    %47 = vector.broadcast %46 : vector<1x896xf32> to vector<16x896xf32>
    %48 = arith.addf %45, %47 : vector<16x896xf32>
    %cst_24 = arith.constant 5.000000e-01 : f32
    %49 = vector.broadcast %cst_24 : f32 to vector<16x896xf32>
    %50 = arith.mulf %49, %48 : vector<16x896xf32>
    %51 = math.tanh %50 : vector<16x896xf32>
    %cst_25 = arith.constant 5.000000e-01 : f32
    %52 = vector.broadcast %cst_25 : f32 to vector<16x896xf32>
    %53 = arith.mulf %52, %51 : vector<16x896xf32>
    %cst_26 = arith.constant 5.000000e-01 : f32
    %54 = vector.broadcast %cst_26 : f32 to vector<16x896xf32>
    %55 = arith.addf %53, %54 : vector<16x896xf32>
    %56 = arith.truncf %55 : vector<16x896xf32> to vector<16x896xbf16>
    %c0_27 = arith.constant 0 : index
    %c0_28 = arith.constant 0 : index
    %57 = vector.load %arg8[%c0_27, %c0_28] : memref<16x896xbf16, #tpu.memory_space<vmem>>, vector<16x896xbf16>
    tpu.vector_store %arg8[%c0_27, %c0_28], %56 {strides = array<i32>} : memref<16x896xbf16, #tpu.memory_space<vmem>>, vector<16x896xbf16>,
    return
  }
  func.func @transform_0(%arg0: i32) -> (i32, i32) {
    %c0_i32 = arith.constant 0 : i32
    %c0_i32_0 = arith.constant 0 : i32
    return %arg0, %c0_i32 : i32, i32
  }
  func.func @transform_1(%arg0: i32) -> (i32, i32) {
    %c0_i32 = arith.constant 0 : i32
    %c0_i32_0 = arith.constant 0 : i32
    return %arg0, %c0_i32 : i32, i32
  }
  func.func @transform_2(%arg0: i32) -> (i32, i32) {
    %c0_i32 = arith.constant 0 : i32
    %c0_i32_0 = arith.constant 0 : i32
    %c0_i32_1 = arith.constant 0 : i32
    return %c0_i32, %c0_i32_0 : i32, i32
  }
  func.func @transform_3(%arg0: i32) -> (i32, i32) {
    %c0_i32 = arith.constant 0 : i32
    %c0_i32_0 = arith.constant 0 : i32
    %c0_i32_1 = arith.constant 0 : i32
    return %c0_i32, %c0_i32_0 : i32, i32
  }
  func.func @transform_4(%arg0: i32) -> (i32, i32) {
    %c0_i32 = arith.constant 0 : i32
    %c0_i32_0 = arith.constant 0 : i32
    %c0_i32_1 = arith.constant 0 : i32
    return %c0_i32, %c0_i32_0 : i32, i32
  }
  func.func @transform_5(%arg0: i32) -> (i32, i32) {
    %c0_i32 = arith.constant 0 : i32
    %c0_i32_0 = arith.constant 0 : i32
    %c0_i32_1 = arith.constant 0 : i32
    return %c0_i32, %c0_i32_0 : i32, i32
  }
  func.func @transform_6(%arg0: i32) -> (i32, i32) {
    %c0_i32 = arith.constant 0 : i32
    %c0_i32_0 = arith.constant 0 : i32
    %c0_i32_1 = arith.constant 0 : i32
    return %c0_i32, %c0_i32_0 : i32, i32
  }
  func.func @transform_7(%arg0: i32) -> (i32, i32) {
    %c0_i32 = arith.constant 0 : i32
    %c0_i32_0 = arith.constant 0 : i32
    return %arg0, %c0_i32 : i32, i32
  }
}

</mosaic_0001>

<llo_original>
// kernel: tpu_custom_call.1
$region0: #{tpu_custom_call.1}
  #allocation0 [shape = 'u32[]', space=smem, size = 0x4, offset = 0x4, fixed_abs, tag = 'smem constant byte address 0x4 - core index']
  #allocation1 [shape = 'u32[144,128]{1,0:T(1,128)}', space=vmem, size = 0x12000, scoped, tag = 'internal scratch']
  %s0 = inlined_call_operand.vmem [shape: f32[16,100], index: 0, kind: input, shape index: {}]
  %s1 = inlined_call_operand.vmem [shape: f32[16,10], index: 1, kind: input, shape index: {}]
  %s2 = inlined_call_operand.vmem [shape: bf16[100,200], index: 2, kind: input, shape index: {}]
  %s3 = inlined_call_operand.vmem [shape: bf16[10,200], index: 3, kind: input, shape index: {}]
  %s4 = inlined_call_operand.vmem [shape: f32[3,200], index: 4, kind: input, shape index: {}]
  %s5 = inlined_call_operand.hbm [shape: bf16[200,896], index: 5, kind: input, shape index: {}]
  %s6 = inlined_call_operand.vmem [shape: f32[1,896], index: 6, kind: input, shape index: {}]
  %s7 = inlined_call_operand.hbm [shape: bf16[16,896], index: 7, kind: output, shape index: {}]
  %s8 = sld [smem:[#allocation0]]
  $region42: #{tpu_custom_call.1} parent=0
    _
  %s10 = ssub.s32 1, %s8
  %s11 = scalar_select 0, %s10, %s8
  $region1: #{tpu_custom_call.1} parent=0
    #allocation2 [shape = 'u8[358400]{0}', space=vmem, size = 0x57800, scoped, tag = 'input window, operand 5, single buffered']
    #allocation3 [shape = 's32[1]{0}', space=sflag, size = 0x4, scoped, tag = 'scoped memory for tpu_custom_call.1']
    #allocation4 [shape = 's32[1]{0}', space=sflag, size = 0x4, scoped, tag = 'scoped memory for tpu_custom_call.1']
    #allocation5 [shape = 'u8[28672]{0}', space=vmem, size = 0x7000, scoped, tag = 'output window, operand 0, single buffered']
    %12 = vsyncpa [#allocation3], 0
    %13 = vsyncpa [#allocation4], 0
    // Predicated region
    $region2: #{tpu_custom_call.1} parent=1 // pred_check
      _
    $region3: #{tpu_custom_call.1} parent=1 // pred_check_branch
      %15 = sbr.rel (0) target = $region5
    $region4: #{tpu_custom_call.1} parent=1 // pred_region
      _
    $region5: #{tpu_custom_call.1} parent=1 // pred_fallthru
      _
    // Predicated region
    $region6: #{tpu_custom_call.1} parent=1 // pred_check
      _
    $region7: #{tpu_custom_call.1} parent=1 // pred_check_branch
      %17 = sbr.rel (0) target = $region9
    $region8: #{tpu_custom_call.1} parent=1 // pred_region
      _
    $region9: #{tpu_custom_call.1} parent=1 // pred_fallthru
      _
    // Predicated region
    $region10: #{tpu_custom_call.1} parent=1 // pred_check
      _
    $region11: #{tpu_custom_call.1} parent=1 // pred_check_branch
      %19 = sbr.rel (0) target = $region13
    $region12: #{tpu_custom_call.1} parent=1 // pred_region
      _
    $region13: #{tpu_custom_call.1} parent=1 // pred_fallthru
      _
    // Predicated region
    $region14: #{tpu_custom_call.1} parent=1 // pred_check
      _
    $region15: #{tpu_custom_call.1} parent=1 // pred_check_branch
      %21 = sbr.rel (0) target = $region17
    $region16: #{tpu_custom_call.1} parent=1 // pred_region
      _
    $region17: #{tpu_custom_call.1} parent=1 // pred_fallthru
      _
    // Predicated region
    $region18: #{tpu_custom_call.1} parent=1 // pred_check
      _
    $region19: #{tpu_custom_call.1} parent=1 // pred_check_branch
      %23 = sbr.rel (0) target = $region21
    $region20: #{tpu_custom_call.1} parent=1 // pred_region
      _
    $region21: #{tpu_custom_call.1} parent=1 // pred_fallthru
      _
    // Predicated region
    $region22: #{tpu_custom_call.1} parent=1 // pred_check
      _
    $region23: #{tpu_custom_call.1} parent=1 // pred_check_branch
      %25 = sbr.rel (0) target = $region25
    $region24: #{tpu_custom_call.1} parent=1 // pred_region
      %s27 = ssub.s32 11200, 11200
      %28 = vsyncadd [#allocation3], %s27
      %s29 = sshll.u32 [#allocation2], 4
      %s30 = int_to_ptr.vmem [resolvable:$true] %s29
      %35 = dma.hbm_to_vmem [thread:$0]  %s5, 11200, %s30, [#allocation3], 448, 448, 28
    $region25: #{tpu_custom_call.1} parent=1 // pred_fallthru
      _
    // Predicated region
    $region26: #{tpu_custom_call.1} parent=1 // pred_check
      _
    $region27: #{tpu_custom_call.1} parent=1 // pred_check_branch
      %37 = sbr.rel (0) target = $region29
    $region28: #{tpu_custom_call.1} parent=1 // pred_region
      _
    $region29: #{tpu_custom_call.1} parent=1 // pred_fallthru
      _
    // Predicated region
    $region30: #{tpu_custom_call.1} parent=1 // pred_check
      _
    $region31: #{tpu_custom_call.1} parent=1 // pred_check_branch
      %39 = sbr.rel (0) target = $region33
    $region32: #{tpu_custom_call.1} parent=1 // pred_region
      %40 = dma.done [#allocation3], 11200
    $region33: #{tpu_custom_call.1} parent=1 // pred_fallthru
      _
    %v42 = vld [vmem:[%s0] sm:$0xff]
    %v43 = vld [vmem:[%s0 + $0x8] sm:$0xff]
    %v44 = vpack.c.bf16 %v43, %v42
    %v45 = vld [vmem:[%s1] sm:$0xff]
    %v46 = vld [vmem:[%s1 + $0x8] sm:$0xff]
    %v47 = vpack.c.bf16 %v46, %v45
    %v48 = vld [vmem:[%s4] ss:$4 sm:$0x3]
    %s49 = scalar_lea.vmem %s4, 1
    %v50 = vld [vmem:[%s49] ss:$4 sm:$0x3]
    %s51 = scalar_lea.vmem %s4, 2
    %v52 = vld [vmem:[%s51] ss:$4 sm:$0x3]
    %v53 = vld [vmem:[%s2] sm:$0xff]
    %v54 = vld [vmem:[%s2 + $0x8] sm:$0xff]
    %v55 = vld [vmem:[%s2 + $0x10] sm:$0xff]
    %v56 = vld [vmem:[%s2 + $0x18] sm:$0xff]
    %v57 = vld [vmem:[%s2 + $0x20] sm:$0xff]
    %v58 = vld [vmem:[%s2 + $0x28] sm:$0xff]
    %v59 = vld [vmem:[%s2 + $0x30] sm:$0xff]
    %v60 = vld [vmem:[%s2 + $0x38] sm:$0xff]
    %v61 = vld [vmem:[%s2 + $0x40] sm:$0xff]
    %v62 = vld [vmem:[%s2 + $0x48] sm:$0xff]
    %v63 = vld [vmem:[%s2 + $0x50] sm:$0xff]
    %v64 = vld [vmem:[%s2 + $0x58] sm:$0xff]
    %v65 = vld [vmem:[%s2 + $0x60] sm:$0x33]
    %v66 = vld [vmem:[%s3] sm:$0xff]
    %v67 = vld [vmem:[%s3 + $0x8] sm:$0x11]
    %v70 = vunpack.c.l.b16 %v66
    %v71 = vunpack.c.h.b16 %v66
    %v72 = vunpack.c.l.b16 %v67
    %v73 = vunpack.c.h.b16 %v67
    %v74 = vpack.c.b16 %v72, %v70
    %v75 = vpack.c.b16 %v73, %v71
    %vm76 = vcmask 80896
    %v78 = vsel %vm76, %v47, 0
    %vm80 = vcmask 1044480
    %v82 = vsel %vm80, %v74, 0
    %v85 = vsel %vm80, %v75, 0
    %87 = vmatprep.subr.bf16.mxu0 0
    %88 = vmatpush1.bf16.msra.mxu0 0
    %89 = vmatprep.subr.bf16.mxu0 0
    %90 = vmatpush1.bf16.msra.mxu0 0
    %91 = vmatprep.subr.bf16.mxu0 0
    %92 = vmatpush1.bf16.msra.mxu0 0
    %93 = vmatprep.subr.bf16.mxu0 0
    %94 = vmatpush1.bf16.msra.mxu0 0
    %95 = vmatprep.subr.bf16.mxu0 0
    %96 = vmatpush1.bf16.msra.mxu0 0
    %97 = vmatprep.subr.bf16.mxu0 0
    %98 = vmatpush1.bf16.msra.mxu0 0
    %99 = vmatprep.subr.bf16.mxu0 0
    %100 = vmatpush1.bf16.msra.mxu0 0
    %101 = vmatprep.subr.bf16.mxu0 %v85
    %102 = vmatpush1.bf16.msra.mxu0 %v82
    %103 = vmatprep.subr.bf16.mxu0 0
    %104 = vmatpush2.bf16.msra.mxu0 0
    %105 = vmatprep.subr.bf16.mxu0 0
    %106 = vmatpush2.bf16.msra.mxu0 0
    %107 = vmatprep.subr.bf16.mxu0 0
    %108 = vmatpush2.bf16.msra.mxu0 0
    %109 = vmatprep.subr.bf16.mxu0 0
    %110 = vmatpush2.bf16.msra.mxu0 0
    %111 = vmatprep.subr.bf16.mxu0 0
    %112 = vmatpush2.bf16.msra.mxu0 0
    %113 = vmatprep.subr.bf16.mxu0 0
    %114 = vmatpush2.bf16.msra.mxu0 0
    %115 = vmatprep.subr.bf16.mxu0 0
    %116 = vmatpush2.bf16.msra.mxu0 0
    %117 = vmatprep.subr.bf16.mxu0 0
    %118 = vmatpush2.bf16.msra.mxu0 0
    %119 = vmatprep.mubr.bf16.mxu0 0
    %120 = vmatmul.mubr.bf16.gmra.mxu0 %v78
    %v121 = vpop.f32.mrf.mxu0
    %v122 = vadd.f32 0.0, %v121
    %v123 = vpop.f32.mrf.mxu0
    %v124 = vadd.f32 0.0, %v123
    %v125 = vpop.f32.mrf.mxu0
    %v126 = vadd.f32 0.0, %v125
    %v127 = vpop.f32.mrf.mxu0
    %v128 = vadd.f32 0.0, %v127
    %129 = vdwg.mxu0
    %v143 = vunpack.c.l.b16 %v53
    %v144 = vunpack.c.h.b16 %v53
    %v145 = vunpack.c.l.b16 %v54
    %v146 = vunpack.c.h.b16 %v54
    %v147 = vunpack.c.l.b16 %v55
    %v148 = vunpack.c.h.b16 %v55
    %v149 = vunpack.c.l.b16 %v56
    %v150 = vunpack.c.h.b16 %v56
    %v151 = vunpack.c.l.b16 %v57
    %v152 = vunpack.c.h.b16 %v57
    %v153 = vunpack.c.l.b16 %v58
    %v154 = vunpack.c.h.b16 %v58
    %v155 = vunpack.c.l.b16 %v59
    %v156 = vunpack.c.h.b16 %v59
    %v157 = vunpack.c.l.b16 %v60
    %v158 = vunpack.c.h.b16 %v60
    %v159 = vunpack.c.l.b16 %v61
    %v160 = vunpack.c.h.b16 %v61
    %v161 = vunpack.c.l.b16 %v62
    %v162 = vunpack.c.h.b16 %v62
    %v163 = vunpack.c.l.b16 %v63
    %v164 = vunpack.c.h.b16 %v63
    %v165 = vunpack.c.l.b16 %v64
    %v166 = vunpack.c.h.b16 %v64
    %v167 = vunpack.c.l.b16 %v65
    %v168 = vunpack.c.h.b16 %v65
    %v169 = vpack.c.b16 %v145, %v143
    %v170 = vpack.c.b16 %v146, %v144
    %v171 = vpack.c.b16 %v149, %v147
    %v172 = vpack.c.b16 %v150, %v148
    %v173 = vpack.c.b16 %v153, %v151
    %v174 = vpack.c.b16 %v154, %v152
    %v175 = vpack.c.b16 %v157, %v155
    %v176 = vpack.c.b16 %v158, %v156
    %v177 = vpack.c.b16 %v161, %v159
    %v178 = vpack.c.b16 %v162, %v160
    %v179 = vpack.c.b16 %v165, %v163
    %v180 = vpack.c.b16 %v166, %v164
    %v181 = vpack.c.b16 %v167, %v167
    %v182 = vpack.c.b16 %v168, %v168
    %vm195 = vcmask 818176
    %v197 = vsel %vm195, %v44, 0
    %vm199 = vcmask 1041408
    %v201 = vsel %vm199, %v181, 0
    %v204 = vsel %vm199, %v182, 0
    %206 = vmatprep.subr.bf16.mxu0 0
    %207 = vmatpush1.bf16.msra.mxu0 0
    %208 = vmatprep.subr.bf16.mxu0 %v204
    %209 = vmatpush1.bf16.msra.mxu0 %v201
    %210 = vmatprep.subr.bf16.mxu0 %v180
    %211 = vmatpush1.bf16.msra.mxu0 %v179
    %212 = vmatprep.subr.bf16.mxu0 %v178
    %213 = vmatpush1.bf16.msra.mxu0 %v177
    %214 = vmatprep.subr.bf16.mxu0 %v176
    %215 = vmatpush1.bf16.msra.mxu0 %v175
    %216 = vmatprep.subr.bf16.mxu0 %v174
    %217 = vmatpush1.bf16.msra.mxu0 %v173
    %218 = vmatprep.subr.bf16.mxu0 %v172
    %219 = vmatpush1.bf16.msra.mxu0 %v171
    %220 = vmatprep.subr.bf16.mxu0 %v170
    %221 = vmatpush1.bf16.msra.mxu0 %v169
    %222 = vmatprep.subr.bf16.mxu0 0
    %223 = vmatpush2.bf16.msra.mxu0 0
    %224 = vmatprep.subr.bf16.mxu0 0
    %225 = vmatpush2.bf16.msra.mxu0 0
    %226 = vmatprep.subr.bf16.mxu0 0
    %227 = vmatpush2.bf16.msra.mxu0 0
    %228 = vmatprep.subr.bf16.mxu0 0
    %229 = vmatpush2.bf16.msra.mxu0 0
    %230 = vmatprep.subr.bf16.mxu0 0
    %231 = vmatpush2.bf16.msra.mxu0 0
    %232 = vmatprep.subr.bf16.mxu0 0
    %233 = vmatpush2.bf16.msra.mxu0 0
    %234 = vmatprep.subr.bf16.mxu0 0
    %235 = vmatpush2.bf16.msra.mxu0 0
    %236 = vmatprep.subr.bf16.mxu0 0
    %237 = vmatpush2.bf16.msra.mxu0 0
    %238 = vmatprep.mubr.bf16.mxu0 0
    %239 = vmatmul.mubr.bf16.gmra.mxu0 %v197
    %v240 = vpop.f32.mrf.mxu0
    %v241 = vadd.f32 %v122, %v240
    %v242 = vpop.f32.mrf.mxu0
    %v243 = vadd.f32 %v124, %v242
    %v244 = vpop.f32.mrf.mxu0
    %v245 = vadd.f32 %v126, %v244
    %v246 = vpop.f32.mrf.mxu0
    %v247 = vadd.f32 %v128, %v246
    %248 = vdwg.mxu0
    %v250 = vlaneseq
    %v251 = vshrl.u32 %v250, 7
    %v252 = vsub.s32 0, %v251
    %v253 = vrot.slane %v48, %v252
    %v254 = vlaneseq
    %v255 = vshrl.u32 %v254, 7
    %v256 = vsub.s32 1, %v255
    %v257 = vrot.slane %v48, %v256
    %v260 = vadd.f32 %v241, %v253
    %v261 = vadd.f32 %v243, %v257
    %v262 = vadd.f32 %v245, %v253
    %v263 = vadd.f32 %v247, %v257
    %vm264 = vcmp.gt.f32.partialorder %v260, 0.0
    %vm265 = vcmp.gt.f32.partialorder %v261, 0.0
    %vm266 = vcmp.gt.f32.partialorder %v262, 0.0
    %vm267 = vcmp.gt.f32.partialorder %v263, 0.0
    %v268 = vmul.f32 %v260, 0.02
    %v269 = vmul.f32 %v261, 0.02
    %v270 = vmul.f32 %v262, 0.02
    %v271 = vmul.f32 %v263, 0.02
    %v272 = vsel %vm264, %v260, %v268
    %v273 = vsel %vm265, %v261, %v269
    %v274 = vsel %vm266, %v262, %v270
    %v275 = vsel %vm267, %v263, %v271
    %vm276 = vcmask 588800
    %v277 = vsel %vm276, %v273, 0.0
    %v278 = vadd.f32 %v272, %v277
    %279 = vadd.xlane.f32.xlu0 %v278
    %v280 = vpop.xlane.xlu0 %279
    %v281 = vsel %vm276, %v275, 0.0
    %v282 = vadd.f32 %v274, %v281
    %283 = vadd.xlane.f32.xlu0 %v282
    %v284 = vpop.xlane.xlu0 %283
    %v285 = vrcp.pop 200.0
    %v286 = vmul.f32 %v280, %v285
    %v287 = vmul.f32 %v284, %v285
    %v288 = vsub.f32 %v272, %v286
    %v289 = vsub.f32 %v273, %v286
    %v290 = vsub.f32 %v274, %v287
    %v291 = vsub.f32 %v275, %v287
    %v292 = vmul.f32 %v288, %v288
    %v293 = vmul.f32 %v289, %v289
    %v294 = vmul.f32 %v290, %v290
    %v295 = vmul.f32 %v291, %v291
    %v296 = vsel %vm276, %v293, 0.0
    %v297 = vadd.f32 %v292, %v296
    %298 = vadd.xlane.f32.xlu0 %v297
    %v299 = vpop.xlane.xlu0 %298
    %v300 = vsel %vm276, %v295, 0.0
    %v301 = vadd.f32 %v294, %v300
    %302 = vadd.xlane.f32.xlu0 %v301
    %v303 = vpop.xlane.xlu0 %302
    %v304 = vmul.f32 %v299, %v285
    %v305 = vmul.f32 %v303, %v285
    %v306 = vadd.f32 %v304, 1e-05
    %v307 = vadd.f32 %v305, 1e-05
    %v308 = vrsqrt.pop %v306
    %v309 = vrsqrt.pop %v307
    %v310 = vmul.f32 %v288, %v308
    %v311 = vmul.f32 %v289, %v308
    %v312 = vmul.f32 %v290, %v309
    %v313 = vmul.f32 %v291, %v309
    %v315 = vlaneseq
    %v316 = vshrl.u32 %v315, 7
    %v317 = vsub.s32 0, %v316
    %v318 = vrot.slane %v50, %v317
    %v319 = vlaneseq
    %v320 = vshrl.u32 %v319, 7
    %v321 = vsub.s32 1, %v320
    %v322 = vrot.slane %v50, %v321
    %v325 = vmul.f32 %v310, %v318
    %v326 = vmul.f32 %v311, %v322
    %v327 = vmul.f32 %v312, %v318
    %v328 = vmul.f32 %v313, %v322
    %v330 = vlaneseq
    %v331 = vshrl.u32 %v330, 7
    %v332 = vsub.s32 0, %v331
    %v333 = vrot.slane %v52, %v332
    %v334 = vlaneseq
    %v335 = vshrl.u32 %v334, 7
    %v336 = vsub.s32 1, %v335
    %v337 = vrot.slane %v52, %v336
    %v340 = vadd.f32 %v325, %v333
    %v341 = vadd.f32 %v326, %v337
    %v342 = vadd.f32 %v327, %v333
    %v343 = vadd.f32 %v328, %v337
    %v344 = vpack.c.bf16 %v342, %v340
    %v345 = vpack.c.bf16 %v343, %v341
    %v346 = vld [vmem:[#allocation2] sm:$0xff]
    %v347 = vld [vmem:[#allocation2 + $0x8] sm:$0xff]
    %v348 = vld [vmem:[#allocation2 + $0x10] sm:$0xff]
    %v349 = vld [vmem:[#allocation2 + $0x18] sm:$0xf]
    %v350 = vld [vmem:[#allocation2 + $0x1c] sm:$0xff]
    %v351 = vld [vmem:[#allocation2 + $0x24] sm:$0xff]
    %v352 = vld [vmem:[#allocation2 + $0x2c] sm:$0xff]
    %v353 = vld [vmem:[#allocation2 + $0x34] sm:$0xf]
    %v354 = vld [vmem:[#allocation2 + $0x38] sm:$0xff]
    %v355 = vld [vmem:[#allocation2 + $0x40] sm:$0xff]
    %v356 = vld [vmem:[#allocation2 + $0x48] sm:$0xff]
    %v357 = vld [vmem:[#allocation2 + $0x50] sm:$0xf]
    %v358 = vld [vmem:[#allocation2 + $0x54] sm:$0xff]
    %v359 = vld [vmem:[#allocation2 + $0x5c] sm:$0xff]
    %v360 = vld [vmem:[#allocation2 + $0x64] sm:$0xff]
    %v361 = vld [vmem:[#allocation2 + $0x6c] sm:$0xf]
    %v362 = vld [vmem:[#allocation2 + $0x70] sm:$0xff]
    %v363 = vld [vmem:[#allocation2 + $0x78] sm:$0xff]
    %v364 = vld [vmem:[#allocation2 + $0x80] sm:$0xff]
    %v365 = vld [vmem:[#allocation2 + $0x88] sm:$0xf]
    %v366 = vld [vmem:[#allocation2 + $0x8c] sm:$0xff]
    %v367 = vld [vmem:[#allocation2 + $0x94] sm:$0xff]
    %v368 = vld [vmem:[#allocation2 + $0x9c] sm:$0xff]
    %v369 = vld [vmem:[#allocation2 + $0xa4] sm:$0xf]
    %v370 = vld [vmem:[#allocation2 + $0xa8] sm:$0xff]
    %v371 = vld [vmem:[#allocation2 + $0xb0] sm:$0xff]
    %v372 = vld [vmem:[#allocation2 + $0xb8] sm:$0xff]
    %v373 = vld [vmem:[#allocation2 + $0xc0] sm:$0xf]
    %v374 = vld [vmem:[#allocation2 + $0xc4] sm:$0xff]
    %v375 = vld [vmem:[#allocation2 + $0xcc] sm:$0xff]
    %v376 = vld [vmem:[#allocation2 + $0xd4] sm:$0xff]
    %v377 = vld [vmem:[#allocation2 + $0xdc] sm:$0xf]
    %v378 = vld [vmem:[#allocation2 + $0xe0] sm:$0xff]
    %v379 = vld [vmem:[#allocation2 + $0xe8] sm:$0xff]
    %v380 = vld [vmem:[#allocation2 + $0xf0] sm:$0xff]
    %v381 = vld [vmem:[#allocation2 + $0xf8] sm:$0xf]
    %v382 = vld [vmem:[#allocation2 + $0xfc] sm:$0xff]
    %v383 = vld [vmem:[#allocation2 + $0x104] sm:$0xff]
    %v384 = vld [vmem:[#allocation2 + $0x10c] sm:$0xff]
    %v385 = vld [vmem:[#allocation2 + $0x114] sm:$0xf]
    %v386 = vld [vmem:[#allocation2 + $0x118] sm:$0xff]
    %v387 = vld [vmem:[#allocation2 + $0x120] sm:$0xff]
    %v388 = vld [vmem:[#allocation2 + $0x128] sm:$0xff]
    %v389 = vld [vmem:[#allocation2 + $0x130] sm:$0xf]
    %v390 = vld [vmem:[#allocation2 + $0x134] sm:$0xff]
    %v391 = vld [vmem:[#allocation2 + $0x13c] sm:$0xff]
    %v392 = vld [vmem:[#allocation2 + $0x144] sm:$0xff]
    %v393 = vld [vmem:[#allocation2 + $0x14c] sm:$0xf]
    %v394 = vld [vmem:[#allocation2 + $0x150] sm:$0xff]
    %v395 = vld [vmem:[#allocation2 + $0x158] sm:$0xff]
    %v396 = vld [vmem:[#allocation2 + $0x160] sm:$0xff]
    %v397 = vld [vmem:[#allocation2 + $0x168] sm:$0xf]
    %v398 = vld [vmem:[#allocation2 + $0x16c] sm:$0xff]
    %v399 = vld [vmem:[#allocation2 + $0x174] sm:$0xff]
    %v400 = vld [vmem:[#allocation2 + $0x17c] sm:$0xff]
    %v401 = vld [vmem:[#allocation2 + $0x184] sm:$0xf]
    %v402 = vld [vmem:[#allocation2 + $0x188] sm:$0xff]
    %v403 = vld [vmem:[#allocation2 + $0x190] sm:$0xff]
    %v404 = vld [vmem:[#allocation2 + $0x198] sm:$0xff]
    %v405 = vld [vmem:[#allocation2 + $0x1a0] sm:$0xf]
    %v406 = vld [vmem:[#allocation2 + $0x1a4] sm:$0xff]
    %v407 = vld [vmem:[#allocation2 + $0x1ac] sm:$0xff]
    %v408 = vld [vmem:[#allocation2 + $0x1b4] sm:$0xff]
    %v409 = vld [vmem:[#allocation2 + $0x1bc] sm:$0xf]
    %v410 = vld [vmem:[#allocation2 + $0x1c0] sm:$0xff]
    %v411 = vld [vmem:[#allocation2 + $0x1c8] sm:$0xff]
    %v412 = vld [vmem:[#allocation2 + $0x1d0] sm:$0xff]
    %v413 = vld [vmem:[#allocation2 + $0x1d8] sm:$0xf]
    %v414 = vld [vmem:[#allocation2 + $0x1dc] sm:$0xff]
    %v415 = vld [vmem:[#allocation2 + $0x1e4] sm:$0xff]
    %v416 = vld [vmem:[#allocation2 + $0x1ec] sm:$0xff]
    %v417 = vld [vmem:[#allocation2 + $0x1f4] sm:$0xf]
    %v418 = vld [vmem:[#allocation2 + $0x1f8] sm:$0xff]
    %v419 = vld [vmem:[#allocation2 + $0x200] sm:$0xff]
    %v420 = vld [vmem:[#allocation2 + $0x208] sm:$0xff]
    %v421 = vld [vmem:[#allocation2 + $0x210] sm:$0xf]
    %v422 = vld [vmem:[#allocation2 + $0x214] sm:$0xff]
    %v423 = vld [vmem:[#allocation2 + $0x21c] sm:$0xff]
    %v424 = vld [vmem:[#allocation2 + $0x224] sm:$0xff]
    %v425 = vld [vmem:[#allocation2 + $0x22c] sm:$0xf]
    %v426 = vld [vmem:[#allocation2 + $0x230] sm:$0xff]
    %v427 = vld [vmem:[#allocation2 + $0x238] sm:$0xff]
    %v428 = vld [vmem:[#allocation2 + $0x240] sm:$0xff]
    %v429 = vld [vmem:[#allocation2 + $0x248] sm:$0xf]
    %v430 = vld [vmem:[#allocation2 + $0x24c] sm:$0xff]
    %v431 = vld [vmem:[#allocation2 + $0x254] sm:$0xff]
    %v432 = vld [vmem:[#allocation2 + $0x25c] sm:$0xff]
    %v433 = vld [vmem:[#allocation2 + $0x264] sm:$0xf]
    %v434 = vld [vmem:[#allocation2 + $0x268] sm:$0xff]
    %v435 = vld [vmem:[#allocation2 + $0x270] sm:$0xff]
    %v436 = vld [vmem:[#allocation2 + $0x278] sm:$0xff]
    %v437 = vld [vmem:[#allocation2 + $0x280] sm:$0xf]
    %v438 = vld [vmem:[#allocation2 + $0x284] sm:$0xff]
    %v439 = vld [vmem:[#allocation2 + $0x28c] sm:$0xff]
    %v440 = vld [vmem:[#allocation2 + $0x294] sm:$0xff]
    %v441 = vld [vmem:[#allocation2 + $0x29c] sm:$0xf]
    %v442 = vld [vmem:[#allocation2 + $0x2a0] sm:$0xff]
    %v443 = vld [vmem:[#allocation2 + $0x2a8] sm:$0xff]
    %v444 = vld [vmem:[#allocation2 + $0x2b0] sm:$0xff]
    %v445 = vld [vmem:[#allocation2 + $0x2b8] sm:$0xf]
    %v446 = vld [vmem:[%s6] sm:$0xff]
    %v448 = vlaneseq
    %v449 = vshrl.u32 %v448, 7
    %v450 = vsub.s32 0, %v449
    %v451 = vrot.slane %v446, %v450
    %v452 = vlaneseq
    %v453 = vshrl.u32 %v452, 7
    %v454 = vsub.s32 1, %v453
    %v455 = vrot.slane %v446, %v454
    %v456 = vlaneseq
    %v457 = vshrl.u32 %v456, 7
    %v458 = vsub.s32 2, %v457
    %v459 = vrot.slane %v446, %v458
    %v460 = vlaneseq
    %v461 = vshrl.u32 %v460, 7
    %v462 = vsub.s32 3, %v461
    %v463 = vrot.slane %v446, %v462
    %v464 = vlaneseq
    %v465 = vshrl.u32 %v464, 7
    %v466 = vsub.s32 4, %v465
    %v467 = vrot.slane %v446, %v466
    %v468 = vlaneseq
    %v469 = vshrl.u32 %v468, 7
    %v470 = vsub.s32 5, %v469
    %v471 = vrot.slane %v446, %v470
    %v472 = vlaneseq
    %v473 = vshrl.u32 %v472, 7
    %v474 = vsub.s32 6, %v473
    %v475 = vrot.slane %v446, %v474
    %v583 = vunpack.c.l.b16 %v346
    %v584 = vunpack.c.h.b16 %v346
    %v585 = vunpack.c.l.b16 %v347
    %v586 = vunpack.c.h.b16 %v347
    %v587 = vunpack.c.l.b16 %v348
    %v588 = vunpack.c.h.b16 %v348
    %v589 = vunpack.c.l.b16 %v349
    %v590 = vunpack.c.l.b16 %v350
    %v591 = vunpack.c.h.b16 %v350
    %v592 = vunpack.c.l.b16 %v351
    %v593 = vunpack.c.h.b16 %v351
    %v594 = vunpack.c.l.b16 %v352
    %v595 = vunpack.c.h.b16 %v352
    %v596 = vunpack.c.l.b16 %v353
    %v597 = vunpack.c.l.b16 %v354
    %v598 = vunpack.c.h.b16 %v354
    %v599 = vunpack.c.l.b16 %v355
    %v600 = vunpack.c.h.b16 %v355
    %v601 = vunpack.c.l.b16 %v356
    %v602 = vunpack.c.h.b16 %v356
    %v603 = vunpack.c.l.b16 %v357
    %v604 = vunpack.c.l.b16 %v358
    %v605 = vunpack.c.h.b16 %v358
    %v606 = vunpack.c.l.b16 %v359
    %v607 = vunpack.c.h.b16 %v359
    %v608 = vunpack.c.l.b16 %v360
    %v609 = vunpack.c.h.b16 %v360
    %v610 = vunpack.c.l.b16 %v361
    %v611 = vunpack.c.l.b16 %v362
    %v612 = vunpack.c.h.b16 %v362
    %v613 = vunpack.c.l.b16 %v363
    %v614 = vunpack.c.h.b16 %v363
    %v615 = vunpack.c.l.b16 %v364
    %v616 = vunpack.c.h.b16 %v364
    %v617 = vunpack.c.l.b16 %v365
    %v618 = vunpack.c.l.b16 %v366
    %v619 = vunpack.c.h.b16 %v366
    %v620 = vunpack.c.l.b16 %v367
    %v621 = vunpack.c.h.b16 %v367
    %v622 = vunpack.c.l.b16 %v368
    %v623 = vunpack.c.h.b16 %v368
    %v624 = vunpack.c.l.b16 %v369
    %v625 = vunpack.c.l.b16 %v370
    %v626 = vunpack.c.h.b16 %v370
    %v627 = vunpack.c.l.b16 %v371
    %v628 = vunpack.c.h.b16 %v371
    %v629 = vunpack.c.l.b16 %v372
    %v630 = vunpack.c.h.b16 %v372
    %v631 = vunpack.c.l.b16 %v373
    %v632 = vunpack.c.l.b16 %v374
    %v633 = vunpack.c.h.b16 %v374
    %v634 = vunpack.c.l.b16 %v375
    %v635 = vunpack.c.h.b16 %v375
    %v636 = vunpack.c.l.b16 %v376
    %v637 = vunpack.c.h.b16 %v376
    %v638 = vunpack.c.l.b16 %v377
    %v639 = vunpack.c.l.b16 %v378
    %v640 = vunpack.c.h.b16 %v378
    %v641 = vunpack.c.l.b16 %v379
    %v642 = vunpack.c.h.b16 %v379
    %v643 = vunpack.c.l.b16 %v380
    %v644 = vunpack.c.h.b16 %v380
    %v645 = vunpack.c.l.b16 %v381
    %v646 = vunpack.c.l.b16 %v382
    %v647 = vunpack.c.h.b16 %v382
    %v648 = vunpack.c.l.b16 %v383
    %v649 = vunpack.c.h.b16 %v383
    %v650 = vunpack.c.l.b16 %v384
    %v651 = vunpack.c.h.b16 %v384
    %v652 = vunpack.c.l.b16 %v385
    %v653 = vunpack.c.l.b16 %v386
    %v654 = vunpack.c.h.b16 %v386
    %v655 = vunpack.c.l.b16 %v387
    %v656 = vunpack.c.h.b16 %v387
    %v657 = vunpack.c.l.b16 %v388
    %v658 = vunpack.c.h.b16 %v388
    %v659 = vunpack.c.l.b16 %v389
    %v660 = vunpack.c.l.b16 %v390
    %v661 = vunpack.c.h.b16 %v390
    %v662 = vunpack.c.l.b16 %v391
    %v663 = vunpack.c.h.b16 %v391
    %v664 = vunpack.c.l.b16 %v392
    %v665 = vunpack.c.h.b16 %v392
    %v666 = vunpack.c.l.b16 %v393
    %v667 = vunpack.c.l.b16 %v394
    %v668 = vunpack.c.h.b16 %v394
    %v669 = vunpack.c.l.b16 %v395
    %v670 = vunpack.c.h.b16 %v395
    %v671 = vunpack.c.l.b16 %v396
    %v672 = vunpack.c.h.b16 %v396
    %v673 = vunpack.c.l.b16 %v397
    %v674 = vunpack.c.l.b16 %v398
    %v675 = vunpack.c.h.b16 %v398
    %v676 = vunpack.c.l.b16 %v399
    %v677 = vunpack.c.h.b16 %v399
    %v678 = vunpack.c.l.b16 %v400
    %v679 = vunpack.c.h.b16 %v400
    %v680 = vunpack.c.l.b16 %v401
    %v681 = vunpack.c.l.b16 %v402
    %v682 = vunpack.c.h.b16 %v402
    %v683 = vunpack.c.l.b16 %v403
    %v684 = vunpack.c.h.b16 %v403
    %v685 = vunpack.c.l.b16 %v404
    %v686 = vunpack.c.h.b16 %v404
    %v687 = vunpack.c.l.b16 %v405
    %v688 = vunpack.c.l.b16 %v406
    %v689 = vunpack.c.h.b16 %v406
    %v690 = vunpack.c.l.b16 %v407
    %v691 = vunpack.c.h.b16 %v407
    %v692 = vunpack.c.l.b16 %v408
    %v693 = vunpack.c.h.b16 %v408
    %v694 = vunpack.c.l.b16 %v409
    %v695 = vunpack.c.l.b16 %v410
    %v696 = vunpack.c.h.b16 %v410
    %v697 = vunpack.c.l.b16 %v411
    %v698 = vunpack.c.h.b16 %v411
    %v699 = vunpack.c.l.b16 %v412
    %v700 = vunpack.c.h.b16 %v412
    %v701 = vunpack.c.l.b16 %v413
    %v702 = vunpack.c.l.b16 %v414
    %v703 = vunpack.c.h.b16 %v414
    %v704 = vunpack.c.l.b16 %v415
    %v705 = vunpack.c.h.b16 %v415
    %v706 = vunpack.c.l.b16 %v416
    %v707 = vunpack.c.h.b16 %v416
    %v708 = vunpack.c.l.b16 %v417
    %v709 = vunpack.c.l.b16 %v418
    %v710 = vunpack.c.h.b16 %v418
    %v711 = vunpack.c.l.b16 %v419
    %v712 = vunpack.c.h.b16 %v419
    %v713 = vunpack.c.l.b16 %v420
    %v714 = vunpack.c.h.b16 %v420
    %v715 = vunpack.c.l.b16 %v421
    %v716 = vunpack.c.l.b16 %v422
    %v717 = vunpack.c.h.b16 %v422
    %v718 = vunpack.c.l.b16 %v423
    %v719 = vunpack.c.h.b16 %v423
    %v720 = vunpack.c.l.b16 %v424
    %v721 = vunpack.c.h.b16 %v424
    %v722 = vunpack.c.l.b16 %v425
    %v723 = vunpack.c.l.b16 %v426
    %v724 = vunpack.c.h.b16 %v426
    %v725 = vunpack.c.l.b16 %v427
    %v726 = vunpack.c.h.b16 %v427
    %v727 = vunpack.c.l.b16 %v428
    %v728 = vunpack.c.h.b16 %v428
    %v729 = vunpack.c.l.b16 %v429
    %v730 = vunpack.c.l.b16 %v430
    %v731 = vunpack.c.h.b16 %v430
    %v732 = vunpack.c.l.b16 %v431
    %v733 = vunpack.c.h.b16 %v431
    %v734 = vunpack.c.l.b16 %v432
    %v735 = vunpack.c.h.b16 %v432
    %v736 = vunpack.c.l.b16 %v433
    %v737 = vunpack.c.l.b16 %v434
    %v738 = vunpack.c.h.b16 %v434
    %v739 = vunpack.c.l.b16 %v435
    %v740 = vunpack.c.h.b16 %v435
    %v741 = vunpack.c.l.b16 %v436
    %v742 = vunpack.c.h.b16 %v436
    %v743 = vunpack.c.l.b16 %v437
    %v744 = vunpack.c.l.b16 %v438
    %v745 = vunpack.c.h.b16 %v438
    %v746 = vunpack.c.l.b16 %v439
    %v747 = vunpack.c.h.b16 %v439
    %v748 = vunpack.c.l.b16 %v440
    %v749 = vunpack.c.h.b16 %v440
    %v750 = vunpack.c.l.b16 %v441
    %v751 = vunpack.c.l.b16 %v442
    %v752 = vunpack.c.h.b16 %v442
    %v753 = vunpack.c.l.b16 %v443
    %v754 = vunpack.c.h.b16 %v443
    %v755 = vunpack.c.l.b16 %v444
    %v756 = vunpack.c.h.b16 %v444
    %v757 = vunpack.c.l.b16 %v445
    %v758 = vpack.c.b16 %v590, %v583
    %v759 = vpack.c.b16 %v591, %v584
    %v760 = vpack.c.b16 %v592, %v585
    %v761 = vpack.c.b16 %v593, %v586
    %v762 = vpack.c.b16 %v594, %v587
    %v763 = vpack.c.b16 %v595, %v588
    %v764 = vpack.c.b16 %v596, %v589
    %v765 = vpack.c.b16 %v604, %v597
    %v766 = vpack.c.b16 %v605, %v598
    %v767 = vpack.c.b16 %v606, %v599
    %v768 = vpack.c.b16 %v607, %v600
    %v769 = vpack.c.b16 %v608, %v601
    %v770 = vpack.c.b16 %v609, %v602
    %v771 = vpack.c.b16 %v610, %v603
    %v772 = vpack.c.b16 %v618, %v611
    %v773 = vpack.c.b16 %v619, %v612
    %v774 = vpack.c.b16 %v620, %v613
    %v775 = vpack.c.b16 %v621, %v614
    %v776 = vpack.c.b16 %v622, %v615
    %v777 = vpack.c.b16 %v623, %v616
    %v778 = vpack.c.b16 %v624, %v617
    %v779 = vpack.c.b16 %v632, %v625
    %v780 = vpack.c.b16 %v633, %v626
    %v781 = vpack.c.b16 %v634, %v627
    %v782 = vpack.c.b16 %v635, %v628
    %v783 = vpack.c.b16 %v636, %v629
    %v784 = vpack.c.b16 %v637, %v630
    %v785 = vpack.c.b16 %v638, %v631
    %v786 = vpack.c.b16 %v646, %v639
    %v787 = vpack.c.b16 %v647, %v640
    %v788 = vpack.c.b16 %v648, %v641
    %v789 = vpack.c.b16 %v649, %v642
    %v790 = vpack.c.b16 %v650, %v643
    %v791 = vpack.c.b16 %v651, %v644
    %v792 = vpack.c.b16 %v652, %v645
    %v793 = vpack.c.b16 %v660, %v653
    %v794 = vpack.c.b16 %v661, %v654
    %v795 = vpack.c.b16 %v662, %v655
    %v796 = vpack.c.b16 %v663, %v656
    %v797 = vpack.c.b16 %v664, %v657
    %v798 = vpack.c.b16 %v665, %v658
    %v799 = vpack.c.b16 %v666, %v659
    %v800 = vpack.c.b16 %v674, %v667
    %v801 = vpack.c.b16 %v675, %v668
    %v802 = vpack.c.b16 %v676, %v669
    %v803 = vpack.c.b16 %v677, %v670
    %v804 = vpack.c.b16 %v678, %v671
    %v805 = vpack.c.b16 %v679, %v672
    %v806 = vpack.c.b16 %v680, %v673
    %v807 = vpack.c.b16 %v688, %v681
    %v808 = vpack.c.b16 %v689, %v682
    %v809 = vpack.c.b16 %v690, %v683
    %v810 = vpack.c.b16 %v691, %v684
    %v811 = vpack.c.b16 %v692, %v685
    %v812 = vpack.c.b16 %v693, %v686
    %v813 = vpack.c.b16 %v694, %v687
    %v814 = vpack.c.b16 %v702, %v695
    %v815 = vpack.c.b16 %v703, %v696
    %v816 = vpack.c.b16 %v704, %v697
    %v817 = vpack.c.b16 %v705, %v698
    %v818 = vpack.c.b16 %v706, %v699
    %v819 = vpack.c.b16 %v707, %v700
    %v820 = vpack.c.b16 %v708, %v701
    %v821 = vpack.c.b16 %v716, %v709
    %v822 = vpack.c.b16 %v717, %v710
    %v823 = vpack.c.b16 %v718, %v711
    %v824 = vpack.c.b16 %v719, %v712
    %v825 = vpack.c.b16 %v720, %v713
    %v826 = vpack.c.b16 %v721, %v714
    %v827 = vpack.c.b16 %v722, %v715
    %v828 = vpack.c.b16 %v730, %v723
    %v829 = vpack.c.b16 %v731, %v724
    %v830 = vpack.c.b16 %v732, %v725
    %v831 = vpack.c.b16 %v733, %v726
    %v832 = vpack.c.b16 %v734, %v727
    %v833 = vpack.c.b16 %v735, %v728
    %v834 = vpack.c.b16 %v736, %v729
    %v835 = vpack.c.b16 %v744, %v737
    %v836 = vpack.c.b16 %v745, %v738
    %v837 = vpack.c.b16 %v746, %v739
    %v838 = vpack.c.b16 %v747, %v740
    %v839 = vpack.c.b16 %v748, %v741
    %v840 = vpack.c.b16 %v749, %v742
    %v841 = vpack.c.b16 %v750, %v743
    %v842 = vpack.c.b16 %v751, %v751
    %v843 = vpack.c.b16 %v752, %v752
    %v844 = vpack.c.b16 %v753, %v753
    %v845 = vpack.c.b16 %v754, %v754
    %v846 = vpack.c.b16 %v755, %v755
    %v847 = vpack.c.b16 %v756, %v756
    %v848 = vpack.c.b16 %v757, %v757
    %v934 = vsel %vm276, %v345, 0
    %vm936 = vcmask 1043456
    %v938 = vsel %vm936, %v842, 0
    %v941 = vsel %vm936, %v843, 0
    %v944 = vsel %vm936, %v844, 0
    %v947 = vsel %vm936, %v845, 0
    %v950 = vsel %vm936, %v846, 0
    %v953 = vsel %vm936, %v847, 0
    %v956 = vsel %vm936, %v848, 0
    %958 = vmatprep.subr.bf16.mxu0 %v808
    %959 = vmatpush1.bf16.msra.mxu0 %v807
    %960 = vmatprep.subr.bf16.mxu0 %v801
    %961 = vmatpush1.bf16.msra.mxu0 %v800
    %962 = vmatprep.subr.bf16.mxu0 %v794
    %963 = vmatpush1.bf16.msra.mxu0 %v793
    %964 = vmatprep.subr.bf16.mxu0 %v787
    %965 = vmatpush1.bf16.msra.mxu0 %v786
    %966 = vmatprep.subr.bf16.mxu0 %v780
    %967 = vmatpush1.bf16.msra.mxu0 %v779
    %968 = vmatprep.subr.bf16.mxu0 %v773
    %969 = vmatpush1.bf16.msra.mxu0 %v772
    %970 = vmatprep.subr.bf16.mxu0 %v766
    %971 = vmatpush1.bf16.msra.mxu0 %v765
    %972 = vmatprep.subr.bf16.mxu0 %v759
    %973 = vmatpush1.bf16.msra.mxu0 %v758
    %974 = vmatprep.subr.bf16.mxu0 0
    %975 = vmatpush2.bf16.msra.mxu0 0
    %976 = vmatprep.subr.bf16.mxu0 0
    %977 = vmatpush2.bf16.msra.mxu0 0
    %978 = vmatprep.subr.bf16.mxu0 0
    %979 = vmatpush2.bf16.msra.mxu0 0
    %980 = vmatprep.subr.bf16.mxu0 %v941
    %981 = vmatpush2.bf16.msra.mxu0 %v938
    %982 = vmatprep.subr.bf16.mxu0 %v836
    %983 = vmatpush2.bf16.msra.mxu0 %v835
    %984 = vmatprep.subr.bf16.mxu0 %v829
    %985 = vmatpush2.bf16.msra.mxu0 %v828
    %986 = vmatprep.subr.bf16.mxu0 %v822
    %987 = vmatpush2.bf16.msra.mxu0 %v821
    %988 = vmatprep.subr.bf16.mxu0 %v815
    %989 = vmatpush2.bf16.msra.mxu0 %v814
    %990 = vmatprep.mubr.bf16.mxu0 %v934
    %991 = vmatmul.mubr.bf16.gmra.mxu0 %v344
    %v992 = vpop.f32.mrf.mxu0
    %v993 = vadd.f32 %v451, %v992
    %v994 = vpop.f32.mrf.mxu0
    %v995 = vadd.f32 %v455, %v994
    %v996 = vpop.f32.mrf.mxu0
    %v997 = vadd.f32 %v451, %v996
    %v998 = vpop.f32.mrf.mxu0
    %v999 = vadd.f32 %v455, %v998
    %1000 = vdwg.mxu0
    %1001 = vmatprep.subr.bf16.mxu0 %v810
    %1002 = vmatpush1.bf16.msra.mxu0 %v809
    %1003 = vmatprep.subr.bf16.mxu0 %v803
    %1004 = vmatpush1.bf16.msra.mxu0 %v802
    %1005 = vmatprep.subr.bf16.mxu0 %v796
    %1006 = vmatpush1.bf16.msra.mxu0 %v795
    %1007 = vmatprep.subr.bf16.mxu0 %v789
    %1008 = vmatpush1.bf16.msra.mxu0 %v788
    %1009 = vmatprep.subr.bf16.mxu0 %v782
    %1010 = vmatpush1.bf16.msra.mxu0 %v781
    %1011 = vmatprep.subr.bf16.mxu0 %v775
    %1012 = vmatpush1.bf16.msra.mxu0 %v774
    %1013 = vmatprep.subr.bf16.mxu0 %v768
    %1014 = vmatpush1.bf16.msra.mxu0 %v767
    %1015 = vmatprep.subr.bf16.mxu0 %v761
    %1016 = vmatpush1.bf16.msra.mxu0 %v760
    %1017 = vmatprep.subr.bf16.mxu0 0
    %1018 = vmatpush2.bf16.msra.mxu0 0
    %1019 = vmatprep.subr.bf16.mxu0 0
    %1020 = vmatpush2.bf16.msra.mxu0 0
    %1021 = vmatprep.subr.bf16.mxu0 0
    %1022 = vmatpush2.bf16.msra.mxu0 0
    %1023 = vmatprep.subr.bf16.mxu0 %v947
    %1024 = vmatpush2.bf16.msra.mxu0 %v944
    %1025 = vmatprep.subr.bf16.mxu0 %v838
    %1026 = vmatpush2.bf16.msra.mxu0 %v837
    %1027 = vmatprep.subr.bf16.mxu0 %v831
    %1028 = vmatpush2.bf16.msra.mxu0 %v830
    %1029 = vmatprep.subr.bf16.mxu0 %v824
    %1030 = vmatpush2.bf16.msra.mxu0 %v823
    %1031 = vmatprep.subr.bf16.mxu0 %v817
    %1032 = vmatpush2.bf16.msra.mxu0 %v816
    %1033 = vmatprep.mubr.bf16.mxu0 %v934
    %1034 = vmatmul.mubr.bf16.gmra.mxu0 %v344
    %v1035 = vpop.f32.mrf.mxu0
    %v1036 = vadd.f32 %v459, %v1035
    %v1037 = vpop.f32.mrf.mxu0
    %v1038 = vadd.f32 %v463, %v1037
    %v1039 = vpop.f32.mrf.mxu0
    %v1040 = vadd.f32 %v459, %v1039
    %v1041 = vpop.f32.mrf.mxu0
    %v1042 = vadd.f32 %v463, %v1041
    %1043 = vdwg.mxu0
    %1044 = vmatprep.subr.bf16.mxu0 %v812
    %1045 = vmatpush1.bf16.msra.mxu0 %v811
    %1046 = vmatprep.subr.bf16.mxu0 %v805
    %1047 = vmatpush1.bf16.msra.mxu0 %v804
    %1048 = vmatprep.subr.bf16.mxu0 %v798
    %1049 = vmatpush1.bf16.msra.mxu0 %v797
    %1050 = vmatprep.subr.bf16.mxu0 %v791
    %1051 = vmatpush1.bf16.msra.mxu0 %v790
    %1052 = vmatprep.subr.bf16.mxu0 %v784
    %1053 = vmatpush1.bf16.msra.mxu0 %v783
    %1054 = vmatprep.subr.bf16.mxu0 %v777
    %1055 = vmatpush1.bf16.msra.mxu0 %v776
    %1056 = vmatprep.subr.bf16.mxu0 %v770
    %1057 = vmatpush1.bf16.msra.mxu0 %v769
    %1058 = vmatprep.subr.bf16.mxu0 %v763
    %1059 = vmatpush1.bf16.msra.mxu0 %v762
    %1060 = vmatprep.subr.bf16.mxu0 0
    %1061 = vmatpush2.bf16.msra.mxu0 0
    %1062 = vmatprep.subr.bf16.mxu0 0
    %1063 = vmatpush2.bf16.msra.mxu0 0
    %1064 = vmatprep.subr.bf16.mxu0 0
    %1065 = vmatpush2.bf16.msra.mxu0 0
    %1066 = vmatprep.subr.bf16.mxu0 %v953
    %1067 = vmatpush2.bf16.msra.mxu0 %v950
    %1068 = vmatprep.subr.bf16.mxu0 %v840
    %1069 = vmatpush2.bf16.msra.mxu0 %v839
    %1070 = vmatprep.subr.bf16.mxu0 %v833
    %1071 = vmatpush2.bf16.msra.mxu0 %v832
    %1072 = vmatprep.subr.bf16.mxu0 %v826
    %1073 = vmatpush2.bf16.msra.mxu0 %v825
    %1074 = vmatprep.subr.bf16.mxu0 %v819
    %1075 = vmatpush2.bf16.msra.mxu0 %v818
    %1076 = vmatprep.mubr.bf16.mxu0 %v934
    %1077 = vmatmul.mubr.bf16.gmra.mxu0 %v344
    %v1078 = vpop.f32.mrf.mxu0
    %v1079 = vadd.f32 %v467, %v1078
    %v1080 = vpop.f32.mrf.mxu0
    %v1081 = vadd.f32 %v471, %v1080
    %v1082 = vpop.f32.mrf.mxu0
    %v1083 = vadd.f32 %v467, %v1082
    %v1084 = vpop.f32.mrf.mxu0
    %v1085 = vadd.f32 %v471, %v1084
    %1086 = vdwg.mxu0
    %1087 = vmatprep.subr.bf16.mxu0 0
    %1088 = vmatpush1.bf16.msra.mxu0 %v813
    %1089 = vmatprep.subr.bf16.mxu0 0
    %1090 = vmatpush1.bf16.msra.mxu0 %v806
    %1091 = vmatprep.subr.bf16.mxu0 0
    %1092 = vmatpush1.bf16.msra.mxu0 %v799
    %1093 = vmatprep.subr.bf16.mxu0 0
    %1094 = vmatpush1.bf16.msra.mxu0 %v792
    %1095 = vmatprep.subr.bf16.mxu0 0
    %1096 = vmatpush1.bf16.msra.mxu0 %v785
    %1097 = vmatprep.subr.bf16.mxu0 0
    %1098 = vmatpush1.bf16.msra.mxu0 %v778
    %1099 = vmatprep.subr.bf16.mxu0 0
    %1100 = vmatpush1.bf16.msra.mxu0 %v771
    %1101 = vmatprep.subr.bf16.mxu0 0
    %1102 = vmatpush1.bf16.msra.mxu0 %v764
    %1103 = vmatprep.subr.bf16.mxu0 0
    %1104 = vmatpush2.bf16.msra.mxu0 0
    %1105 = vmatprep.subr.bf16.mxu0 0
    %1106 = vmatpush2.bf16.msra.mxu0 0
    %1107 = vmatprep.subr.bf16.mxu0 0
    %1108 = vmatpush2.bf16.msra.mxu0 0
    %1109 = vmatprep.subr.bf16.mxu0 0
    %1110 = vmatpush2.bf16.msra.mxu0 %v956
    %1111 = vmatprep.subr.bf16.mxu0 0
    %1112 = vmatpush2.bf16.msra.mxu0 %v841
    %1113 = vmatprep.subr.bf16.mxu0 0
    %1114 = vmatpush2.bf16.msra.mxu0 %v834
    %1115 = vmatprep.subr.bf16.mxu0 0
    %1116 = vmatpush2.bf16.msra.mxu0 %v827
    %1117 = vmatprep.subr.bf16.mxu0 0
    %1118 = vmatpush2.bf16.msra.mxu0 %v820
    %1119 = vmatprep.mubr.bf16.mxu0 %v934
    %1120 = vmatmul.mubr.bf16.gmra.mxu0 %v344
    %v1121 = vpop.f32.mrf.mxu0
    %v1122 = vadd.f32 %v475, %v1121
    %v1123 = vpop.f32.mrf.mxu0
    %v1124 = vpop.f32.mrf.mxu0
    %v1125 = vadd.f32 %v475, %v1124
    %v1126 = vpop.f32.mrf.mxu0
    %1127 = vdwg.mxu0
    %v1128 = vmul.f32 %v993, 0.5
    %v1129 = vmul.f32 %v995, 0.5
    %v1130 = vmul.f32 %v1036, 0.5
    %v1131 = vmul.f32 %v1038, 0.5
    %v1132 = vmul.f32 %v1079, 0.5
    %v1133 = vmul.f32 %v1081, 0.5
    %v1134 = vmul.f32 %v1122, 0.5
    %v1135 = vmul.f32 %v997, 0.5
    %v1136 = vmul.f32 %v999, 0.5
    %v1137 = vmul.f32 %v1040, 0.5
    %v1138 = vmul.f32 %v1042, 0.5
    %v1139 = vmul.f32 %v1083, 0.5
    %v1140 = vmul.f32 %v1085, 0.5
    %v1141 = vmul.f32 %v1125, 0.5
    %v1142 = vtanh.pop %v1128
    %v1143 = vtanh.pop %v1129
    %v1144 = vtanh.pop %v1130
    %v1145 = vtanh.pop %v1131
    %v1146 = vtanh.pop %v1132
    %v1147 = vtanh.pop %v1133
    %v1148 = vtanh.pop %v1134
    %v1149 = vtanh.pop %v1135
    %v1150 = vtanh.pop %v1136
    %v1151 = vtanh.pop %v1137
    %v1152 = vtanh.pop %v1138
    %v1153 = vtanh.pop %v1139
    %v1154 = vtanh.pop %v1140
    %v1155 = vtanh.pop %v1141
    %v1156 = vmul.f32 %v1142, 0.5
    %v1157 = vmul.f32 %v1143, 0.5
    %v1158 = vmul.f32 %v1144, 0.5
    %v1159 = vmul.f32 %v1145, 0.5
    %v1160 = vmul.f32 %v1146, 0.5
    %v1161 = vmul.f32 %v1147, 0.5
    %v1162 = vmul.f32 %v1148, 0.5
    %v1163 = vmul.f32 %v1149, 0.5
    %v1164 = vmul.f32 %v1150, 0.5
    %v1165 = vmul.f32 %v1151, 0.5
    %v1166 = vmul.f32 %v1152, 0.5
    %v1167 = vmul.f32 %v1153, 0.5
    %v1168 = vmul.f32 %v1154, 0.5
    %v1169 = vmul.f32 %v1155, 0.5
    %v1170 = vadd.f32 %v1156, 0.5
    %v1171 = vadd.f32 %v1157, 0.5
    %v1172 = vadd.f32 %v1158, 0.5
    %v1173 = vadd.f32 %v1159, 0.5
    %v1174 = vadd.f32 %v1160, 0.5
    %v1175 = vadd.f32 %v1161, 0.5
    %v1176 = vadd.f32 %v1162, 0.5
    %v1177 = vadd.f32 %v1163, 0.5
    %v1178 = vadd.f32 %v1164, 0.5
    %v1179 = vadd.f32 %v1165, 0.5
    %v1180 = vadd.f32 %v1166, 0.5
    %v1181 = vadd.f32 %v1167, 0.5
    %v1182 = vadd.f32 %v1168, 0.5
    %v1183 = vadd.f32 %v1169, 0.5
    %v1184 = vpack.c.bf16 %v1177, %v1170
    %v1185 = vpack.c.bf16 %v1178, %v1171
    %v1186 = vpack.c.bf16 %v1179, %v1172
    %v1187 = vpack.c.bf16 %v1180, %v1173
    %v1188 = vpack.c.bf16 %v1181, %v1174
    %v1189 = vpack.c.bf16 %v1182, %v1175
    %v1190 = vpack.c.bf16 %v1183, %v1176
    %v1198 = vunpack.c.l.b16 %v1184
    %v1199 = vunpack.c.l.b16 %v1185
    %v1200 = vunpack.c.l.b16 %v1186
    %v1201 = vunpack.c.l.b16 %v1187
    %v1202 = vunpack.c.l.b16 %v1188
    %v1203 = vunpack.c.l.b16 %v1189
    %v1204 = vunpack.c.l.b16 %v1190
    %v1205 = vunpack.c.h.b16 %v1184
    %v1206 = vunpack.c.h.b16 %v1185
    %v1207 = vunpack.c.h.b16 %v1186
    %v1208 = vunpack.c.h.b16 %v1187
    %v1209 = vunpack.c.h.b16 %v1188
    %v1210 = vunpack.c.h.b16 %v1189
    %v1211 = vunpack.c.h.b16 %v1190
    %v1212 = vpack.c.b16 %v1199, %v1198
    %v1213 = vpack.c.b16 %v1201, %v1200
    %v1214 = vpack.c.b16 %v1203, %v1202
    %v1215 = vpack.c.b16 %v1204, %v1204
    %v1216 = vpack.c.b16 %v1206, %v1205
    %v1217 = vpack.c.b16 %v1208, %v1207
    %v1218 = vpack.c.b16 %v1210, %v1209
    %v1219 = vpack.c.b16 %v1211, %v1211
    %1228 = vst [vmem:[#allocation5] sm:$0xff] %v1212
    %1229 = vst [vmem:[#allocation5 + $0x8] sm:$0xff] %v1213
    %1230 = vst [vmem:[#allocation5 + $0x10] sm:$0xff] %v1214
    %1231 = vst [vmem:[#allocation5 + $0x18] sm:$0xf] %v1215
    %1232 = vst [vmem:[#allocation5 + $0x1c] sm:$0xff] %v1216
    %1233 = vst [vmem:[#allocation5 + $0x24] sm:$0xff] %v1217
    %1234 = vst [vmem:[#allocation5 + $0x2c] sm:$0xff] %v1218
    %1235 = vst [vmem:[#allocation5 + $0x34] sm:$0xf] %v1219
    // Predicated region
    $region34: #{tpu_custom_call.1} parent=1 // pred_check
      _
    $region35: #{tpu_custom_call.1} parent=1 // pred_check_branch
      %1237 = sbr.rel (0) target = $region37
    $region36: #{tpu_custom_call.1} parent=1 // pred_region
      %s1239 = ssub.s32 896, 896
      %1240 = vsyncadd [#allocation4], %s1239
      %s1241 = sshll.u32 [#allocation5], 4
      %s1242 = int_to_ptr.vmem [resolvable:$true] %s1241
      %1247 = dma.vmem_to_hbm [thread:$0]  %s1242, 896, %s7, [#allocation4], 448, 448, 28
    $region37: #{tpu_custom_call.1} parent=1 // pred_fallthru
      _
    // Predicated region
    $region38: #{tpu_custom_call.1} parent=1 // pred_check
      _
    $region39: #{tpu_custom_call.1} parent=1 // pred_check_branch
      %1249 = sbr.rel (0) target = $region41
    $region40: #{tpu_custom_call.1} parent=1 // pred_region
      %1250 = dma.done [#allocation4], 896
    $region41: #{tpu_custom_call.1} parent=1 // pred_fallthru
      _
    %1251 = vsyncpa [#allocation3], 1
    %1252 = vsyncpa [#allocation4], 1

</llo_original>
